<compile_context>
chip_gen: v5e
topology: v5e:2x2
jax: 0.10.0
libtpu: 0.0.40
codegen_flags: <defaults>
</compile_context>

<pallas_src>
import jax
import jax.numpy as jnp
from jax.experimental import pallas as pl
from jax.experimental.pallas import tpu as pltpu


def _make_sisnr_kernel(t_tile: int, acc_w: int, min_length: int, num_tiles: int):
    """Build the streaming SI-SNR kernel for static tile / length parameters."""
    n_chunks = t_tile // acc_w
    needs_mask = (min_length % t_tile) != 0
    last_tile = num_tiles - 1
    # Number of valid samples inside the last tile (== t_tile when no masking).
    rem = min_length - last_tile * t_tile

    def kernel(enh_ref, cln_ref, out_ref, sx, sy, sxy, sxx, syy):
        t = pl.program_id(0)

        # ---- init accumulators on the first tile --------------------------
        @pl.when(t == 0)
        def _():
            sx[...] = jnp.zeros_like(sx)
            sy[...] = jnp.zeros_like(sy)
            sxy[...] = jnp.zeros_like(sxy)
            sxx[...] = jnp.zeros_like(sxx)
            syy[...] = jnp.zeros_like(syy)

        # ---- single-pass moment accumulation (lane-fold to acc_w) ---------
        def accumulate(masked: bool):
            ax = sx[...]
            ay = sy[...]
            axy = sxy[...]
            axx = sxx[...]
            ayy = syy[...]
            chunks = (rem + acc_w - 1) // acc_w if masked else n_chunks
            for c in range(chunks):
                xs = enh_ref[:, c * acc_w:(c + 1) * acc_w].astype(jnp.float32)
                ys = cln_ref[:, c * acc_w:(c + 1) * acc_w].astype(jnp.float32)
                if masked:
                    # This branch only runs at t == last_tile, so the chunk
                    # origin is a compile-time constant.
                    chunk_start = last_tile * t_tile + c * acc_w
                    if chunk_start + acc_w > min_length:
                        col = chunk_start + jax.lax.broadcasted_iota(
                            jnp.int32, xs.shape, 1)
                        valid = col < min_length
                        # Mask BEFORE the multiplies (padding may be garbage/NaN).
                        xs = jnp.where(valid, xs, 0.0)
                        ys = jnp.where(valid, ys, 0.0)
                ax = ax + xs
                ay = ay + ys
                axy = axy + xs * ys
                axx = axx + xs * xs
                ayy = ayy + ys * ys
            sx[...] = ax
            sy[...] = ay
            sxy[...] = axy
            sxx[...] = axx
            syy[...] = ayy

        if needs_mask:
            @pl.when(t != last_tile)
            def _():
                accumulate(masked=False)

            @pl.when(t == last_tile)
            def _():
                accumulate(masked=True)
        else:
            accumulate(masked=False)

        # ---- finalize on the last tile -------------------------------------
        @pl.when(t == last_tile)
        def _():
            n = jnp.float32(min_length)
            sx_t = jnp.sum(sx[...], axis=-1, keepdims=True)
            sy_t = jnp.sum(sy[...], axis=-1, keepdims=True)
            sxy_t = jnp.sum(sxy[...], axis=-1, keepdims=True)
            sxx_t = jnp.sum(sxx[...], axis=-1, keepdims=True)
            syy_t = jnp.sum(syy[...], axis=-1, keepdims=True)
            # Centered moments via identities:
            #   dot = Σ(x-x̄)(y-ȳ) = Σxy - ΣxΣy/n
            #   te  = Σ(y-ȳ)²     = Σyy - (Σy)²/n
            #   xe  = Σ(x-x̄)²     = Σxx - (Σx)²/n
            dot = sxy_t - sx_t * sy_t / n
            te = syy_t - sy_t * sy_t / n
            xe = sxx_t - sx_t * sx_t / n

            alpha = dot / (te + 1e-8)                    # s_target scale
            s_target_energy = alpha * alpha * te         # Σ s_target²
            e_noise_energy = xe - 2.0 * alpha * dot + alpha * alpha * te

            si_snr = 10.0 * jnp.log10(
                s_target_energy / (e_noise_energy + 1e-8))       # (B, 1)
            out_ref[...] = si_snr.astype(out_ref.dtype)

    return kernel


def sisnr_loss(enhanced_signal: jax.Array, clean_signal: jax.Array) -> jax.Array:
    """Negative SI-SNR loss. Inputs: (B, T_e), (B, T_c). Returns scalar f32."""
    B, t_enh = enhanced_signal.shape
    b_cln, t_cln = clean_signal.shape
    assert B == b_cln, "batch dims must match"
    min_length = min(t_enh, t_cln)

    # ---- tile sizing with sublane-padding-aware VMEM accounting ------------
    itemsize = max(jnp.dtype(enhanced_signal.dtype).itemsize,
                   jnp.dtype(clean_signal.dtype).itemsize)
    # Sublane packing: f32 -> 8 rows, bf16 -> 16, int8/fp8 -> 32.
    sublanes = 8 * max(1, 4 // itemsize)
    b_pad = -(-B // sublanes) * sublanes

    _MAX_BLOCK_BYTES = 2 * 1024 * 1024   # per input per pipeline buffer (padded)
    _MAX_TILE_LANES = 128 * 128          # caps the unrolled chunk count at 128

    if min_length >= 128:
        lanes_budget = max(
            128, (_MAX_BLOCK_BYTES // (b_pad * itemsize)) // 128 * 128)
        # Largest multiple of 128 that is <= min_length (so every block origin
        # is in-bounds for BOTH arrays; only the last block may overhang).
        t_tile = min((min_length // 128) * 128, lanes_budget, _MAX_TILE_LANES)
        enh_in, cln_in = enhanced_signal, clean_signal
    else:
        # Tiny-signal fallback: a slice copy of <128 samples/row is negligible
        # and lets the lane dim equal the full (shared) array extent.
        enh_in = enhanced_signal[:, :min_length]
        cln_in = clean_signal[:, :min_length]
        t_tile = min_length

    acc_w = min(128, t_tile)
    num_tiles = -(-min_length // t_tile)

    kernel = _make_sisnr_kernel(t_tile, acc_w, min_length, num_tiles)

    si_snr = pl.pallas_call(
        kernel,
        out_shape=jax.ShapeDtypeStruct((B, 1), jnp.float32),
        grid=(num_tiles,),
        in_specs=[
            pl.BlockSpec((B, t_tile), lambda t: (0, t)),
            pl.BlockSpec((B, t_tile), lambda t: (0, t)),
        ],
        out_specs=pl.BlockSpec((B, 1), lambda t: (0, 0)),
        scratch_shapes=[
            pltpu.VMEM((B, acc_w), jnp.float32) for _ in range(5)  # Σx Σy Σxy Σxx Σyy
        ],
        compiler_params=pltpu.CompilerParams(
            dimension_semantics=("arbitrary",),      # T is a reduction axis
            vmem_limit_bytes=32 * 1024 * 1024,
        ),
    )(enh_in, cln_in)

    return -jnp.mean(si_snr)


def _sisnr_loss_ref(enh, cln):
    """Pure-JAX reference mirroring the PyTorch module."""
    min_length = min(enh.shape[-1], cln.shape[-1])
    enh = enh[:, :min_length].astype(jnp.float32)
    cln = cln[:, :min_length].astype(jnp.float32)
    enh = enh - jnp.mean(enh, axis=-1, keepdims=True)
    cln = cln - jnp.mean(cln, axis=-1, keepdims=True)
    dot = jnp.sum(enh * cln, axis=-1, keepdims=True)
    te = jnp.sum(cln ** 2, axis=-1, keepdims=True)
    s_target = dot / (te + 1e-8) * cln
    e_noise = enh - s_target
    st_e = jnp.sum(s_target ** 2, axis=-1)
    en_e = jnp.sum(e_noise ** 2, axis=-1)
    si_snr = 10.0 * jnp.log10(st_e / (en_e + 1e-8))
    return -jnp.mean(si_snr)


if __name__ == "__main__":
    key = jax.random.PRNGKey(0)
    k1, k2, k3, k4 = jax.random.split(key, 4)

    # Case 1: different lengths, single tile (min_length multiple of 128).
    enhanced = jax.random.normal(k1, (2, 384), dtype=jnp.float32)
    clean = jax.random.normal(k2, (2, 256), dtype=jnp.float32)
    loss = sisnr_loss(enhanced, clean)
    jax.block_until_ready(loss)
    ref = _sisnr_loss_ref(enhanced, clean)
    assert jnp.allclose(loss, ref, atol=1e-3, rtol=1e-3), (loss, ref)

    # Case 2: non-multiple-of-128 min_length, exercises multi-tile + masked
    # final tile (predicated path).
    enhanced2 = jax.random.normal(k3, (2, 1000), dtype=jnp.float32)
    clean2 = jax.random.normal(k4, (2, 777), dtype=jnp.float32)
    loss2 = sisnr_loss(enhanced2, clean2)
    jax.block_until_ready(loss2)
    ref2 = _sisnr_loss_ref(enhanced2, clean2)
    assert jnp.allclose(loss2, ref2, atol=1e-3, rtol=1e-3), (loss2, ref2)

    print("KERNEL_OK")
</pallas_src>

<mosaic_0001>
module attributes {stable_mosaic.version = 11 : i64} {
  func.func @kernel(%arg0: i32, %arg1: memref<2x256xf32, #tpu.memory_space<vmem>>, %arg2: memref<2x256xf32, #tpu.memory_space<vmem>>, %arg3: memref<2x1xf32, #tpu.memory_space<vmem>>, %arg4: memref<2x128xf32, #tpu.memory_space<vmem>>, %arg5: memref<2x128xf32, #tpu.memory_space<vmem>>, %arg6: memref<2x128xf32, #tpu.memory_space<vmem>>, %arg7: memref<2x128xf32, #tpu.memory_space<vmem>>, %arg8: memref<2x128xf32, #tpu.memory_space<vmem>>) attributes {dimension_semantics = [#tpu.dimension_semantics<arbitrary>], iteration_bounds = array<i64: 1>, scalar_prefetch = 0 : i64, scratch_operands = 5 : i64, tpu.core_type = #tpu.core_type<tc>, window_params = [{transform_indices = @transform_0, window_bounds = array<i64: 2, 256>}, {transform_indices = @transform_1, window_bounds = array<i64: 2, 256>}, {pipeline_mode = #tpu.pipeline_mode<synchronous>, transform_indices = @transform_2, window_bounds = array<i64: 2, 1>}]} {
    %c0_i32 = arith.constant 0 : i32
    %0 = arith.cmpi eq, %arg0, %c0_i32 : i32
    %1 = arith.extui %0 : i1 to i32
    %c0_i32_0 = arith.constant 0 : i32
    %2 = arith.cmpi ne, %1, %c0_i32_0 : i32
    scf.if %2 {
      %cst = arith.constant 0.000000e+00 : f32
      %36 = vector.broadcast %cst : f32 to vector<2x128xf32>
      %c0_29 = arith.constant 0 : index
      %c0_30 = arith.constant 0 : index
      %37 = vector.load %arg4[%c0_29, %c0_30] : memref<2x128xf32, #tpu.memory_space<vmem>>, vector<2x128xf32>
      tpu.vector_store %arg4[%c0_29, %c0_30], %36 {strides = array<i32>} : memref<2x128xf32, #tpu.memory_space<vmem>>, vector<2x128xf32>,
      %cst_31 = arith.constant 0.000000e+00 : f32
      %38 = vector.broadcast %cst_31 : f32 to vector<2x128xf32>
      %c0_32 = arith.constant 0 : index
      %c0_33 = arith.constant 0 : index
      %39 = vector.load %arg5[%c0_32, %c0_33] : memref<2x128xf32, #tpu.memory_space<vmem>>, vector<2x128xf32>
      tpu.vector_store %arg5[%c0_32, %c0_33], %38 {strides = array<i32>} : memref<2x128xf32, #tpu.memory_space<vmem>>, vector<2x128xf32>,
      %cst_34 = arith.constant 0.000000e+00 : f32
      %40 = vector.broadcast %cst_34 : f32 to vector<2x128xf32>
      %c0_35 = arith.constant 0 : index
      %c0_36 = arith.constant 0 : index
      %41 = vector.load %arg6[%c0_35, %c0_36] : memref<2x128xf32, #tpu.memory_space<vmem>>, vector<2x128xf32>
      tpu.vector_store %arg6[%c0_35, %c0_36], %40 {strides = array<i32>} : memref<2x128xf32, #tpu.memory_space<vmem>>, vector<2x128xf32>,
      %cst_37 = arith.constant 0.000000e+00 : f32
      %42 = vector.broadcast %cst_37 : f32 to vector<2x128xf32>
      %c0_38 = arith.constant 0 : index
      %c0_39 = arith.constant 0 : index
      %43 = vector.load %arg7[%c0_38, %c0_39] : memref<2x128xf32, #tpu.memory_space<vmem>>, vector<2x128xf32>
      tpu.vector_store %arg7[%c0_38, %c0_39], %42 {strides = array<i32>} : memref<2x128xf32, #tpu.memory_space<vmem>>, vector<2x128xf32>,
      %cst_40 = arith.constant 0.000000e+00 : f32
      %44 = vector.broadcast %cst_40 : f32 to vector<2x128xf32>
      %c0_41 = arith.constant 0 : index
      %c0_42 = arith.constant 0 : index
      %45 = vector.load %arg8[%c0_41, %c0_42] : memref<2x128xf32, #tpu.memory_space<vmem>>, vector<2x128xf32>
      tpu.vector_store %arg8[%c0_41, %c0_42], %44 {strides = array<i32>} : memref<2x128xf32, #tpu.memory_space<vmem>>, vector<2x128xf32>,
    } else {
    }
    %c0 = arith.constant 0 : index
    %c0_1 = arith.constant 0 : index
    %3 = vector.load %arg4[%c0, %c0_1] : memref<2x128xf32, #tpu.memory_space<vmem>>, vector<2x128xf32>
    %c0_2 = arith.constant 0 : index
    %c0_3 = arith.constant 0 : index
    %4 = vector.load %arg5[%c0_2, %c0_3] : memref<2x128xf32, #tpu.memory_space<vmem>>, vector<2x128xf32>
    %c0_4 = arith.constant 0 : index
    %c0_5 = arith.constant 0 : index
    %5 = vector.load %arg6[%c0_4, %c0_5] : memref<2x128xf32, #tpu.memory_space<vmem>>, vector<2x128xf32>
    %c0_6 = arith.constant 0 : index
    %c0_7 = arith.constant 0 : index
    %6 = vector.load %arg7[%c0_6, %c0_7] : memref<2x128xf32, #tpu.memory_space<vmem>>, vector<2x128xf32>
    %c0_8 = arith.constant 0 : index
    %c0_9 = arith.constant 0 : index
    %7 = vector.load %arg8[%c0_8, %c0_9] : memref<2x128xf32, #tpu.memory_space<vmem>>, vector<2x128xf32>
    %c0_10 = arith.constant 0 : index
    %c0_11 = arith.constant 0 : index
    %8 = vector.load %arg1[%c0_10, %c0_11] : memref<2x256xf32, #tpu.memory_space<vmem>>, vector<2x128xf32>
    %c0_12 = arith.constant 0 : index
    %c0_13 = arith.constant 0 : index
    %9 = vector.load %arg2[%c0_12, %c0_13] : memref<2x256xf32, #tpu.memory_space<vmem>>, vector<2x128xf32>
    %10 = arith.addf %3, %8 : vector<2x128xf32>
    %11 = arith.addf %4, %9 : vector<2x128xf32>
    %12 = arith.mulf %8, %9 : vector<2x128xf32>
    %13 = arith.addf %5, %12 : vector<2x128xf32>
    %14 = arith.mulf %8, %8 : vector<2x128xf32>
    %15 = arith.addf %6, %14 : vector<2x128xf32>
    %16 = arith.mulf %9, %9 : vector<2x128xf32>
    %17 = arith.addf %7, %16 : vector<2x128xf32>
    %c0_14 = arith.constant 0 : index
    %c128 = arith.constant 128 : index
    %18 = vector.load %arg1[%c0_14, %c128] : memref<2x256xf32, #tpu.memory_space<vmem>>, vector<2x128xf32>
    %c0_15 = arith.constant 0 : index
    %c128_16 = arith.constant 128 : index
    %19 = vector.load %arg2[%c0_15, %c128_16] : memref<2x256xf32, #tpu.memory_space<vmem>>, vector<2x128xf32>
    %20 = arith.addf %10, %18 : vector<2x128xf32>
    %21 = arith.addf %11, %19 : vector<2x128xf32>
    %22 = arith.mulf %18, %19 : vector<2x128xf32>
    %23 = arith.addf %13, %22 : vector<2x128xf32>
    %24 = arith.mulf %18, %18 : vector<2x128xf32>
    %25 = arith.addf %15, %24 : vector<2x128xf32>
    %26 = arith.mulf %19, %19 : vector<2x128xf32>
    %27 = arith.addf %17, %26 : vector<2x128xf32>
    %c0_17 = arith.constant 0 : index
    %c0_18 = arith.constant 0 : index
    %28 = vector.load %arg4[%c0_17, %c0_18] : memref<2x128xf32, #tpu.memory_space<vmem>>, vector<2x128xf32>
    tpu.vector_store %arg4[%c0_17, %c0_18], %20 {strides = array<i32>} : memref<2x128xf32, #tpu.memory_space<vmem>>, vector<2x128xf32>,
    %c0_19 = arith.constant 0 : index
    %c0_20 = arith.constant 0 : index
    %29 = vector.load %arg5[%c0_19, %c0_20] : memref<2x128xf32, #tpu.memory_space<vmem>>, vector<2x128xf32>
    tpu.vector_store %arg5[%c0_19, %c0_20], %21 {strides = array<i32>} : memref<2x128xf32, #tpu.memory_space<vmem>>, vector<2x128xf32>,
    %c0_21 = arith.constant 0 : index
    %c0_22 = arith.constant 0 : index
    %30 = vector.load %arg6[%c0_21, %c0_22] : memref<2x128xf32, #tpu.memory_space<vmem>>, vector<2x128xf32>
    tpu.vector_store %arg6[%c0_21, %c0_22], %23 {strides = array<i32>} : memref<2x128xf32, #tpu.memory_space<vmem>>, vector<2x128xf32>,
    %c0_23 = arith.constant 0 : index
    %c0_24 = arith.constant 0 : index
    %31 = vector.load %arg7[%c0_23, %c0_24] : memref<2x128xf32, #tpu.memory_space<vmem>>, vector<2x128xf32>
    tpu.vector_store %arg7[%c0_23, %c0_24], %25 {strides = array<i32>} : memref<2x128xf32, #tpu.memory_space<vmem>>, vector<2x128xf32>,
    %c0_25 = arith.constant 0 : index
    %c0_26 = arith.constant 0 : index
    %32 = vector.load %arg8[%c0_25, %c0_26] : memref<2x128xf32, #tpu.memory_space<vmem>>, vector<2x128xf32>
    tpu.vector_store %arg8[%c0_25, %c0_26], %27 {strides = array<i32>} : memref<2x128xf32, #tpu.memory_space<vmem>>, vector<2x128xf32>,
    %c0_i32_27 = arith.constant 0 : i32
    %33 = arith.cmpi eq, %arg0, %c0_i32_27 : i32
    %34 = arith.extui %33 : i1 to i32
    %c0_i32_28 = arith.constant 0 : i32
    %35 = arith.cmpi ne, %34, %c0_i32_28 : i32
    scf.if %35 {
      %c0_29 = arith.constant 0 : index
      %c0_30 = arith.constant 0 : index
      %36 = vector.load %arg4[%c0_29, %c0_30] : memref<2x128xf32, #tpu.memory_space<vmem>>, vector<2x128xf32>
      %cst = arith.constant dense<0.000000e+00> : vector<2xf32>
      %37 = vector.multi_reduction <add>, %36, %cst [1] : vector<2x128xf32> to vector<2xf32>
      %38 = vector.shape_cast %37 : vector<2xf32> to vector<2x1xf32>
      %c0_31 = arith.constant 0 : index
      %c0_32 = arith.constant 0 : index
      %39 = vector.load %arg5[%c0_31, %c0_32] : memref<2x128xf32, #tpu.memory_space<vmem>>, vector<2x128xf32>
      %cst_33 = arith.constant dense<0.000000e+00> : vector<2xf32>
      %40 = vector.multi_reduction <add>, %39, %cst_33 [1] : vector<2x128xf32> to vector<2xf32>
      %41 = vector.shape_cast %40 : vector<2xf32> to vector<2x1xf32>
      %c0_34 = arith.constant 0 : index
      %c0_35 = arith.constant 0 : index
      %42 = vector.load %arg6[%c0_34, %c0_35] : memref<2x128xf32, #tpu.memory_space<vmem>>, vector<2x128xf32>
      %cst_36 = arith.constant dense<0.000000e+00> : vector<2xf32>
      %43 = vector.multi_reduction <add>, %42, %cst_36 [1] : vector<2x128xf32> to vector<2xf32>
      %44 = vector.shape_cast %43 : vector<2xf32> to vector<2x1xf32>
      %c0_37 = arith.constant 0 : index
      %c0_38 = arith.constant 0 : index
      %45 = vector.load %arg7[%c0_37, %c0_38] : memref<2x128xf32, #tpu.memory_space<vmem>>, vector<2x128xf32>
      %cst_39 = arith.constant dense<0.000000e+00> : vector<2xf32>
      %46 = vector.multi_reduction <add>, %45, %cst_39 [1] : vector<2x128xf32> to vector<2xf32>
      %47 = vector.shape_cast %46 : vector<2xf32> to vector<2x1xf32>
      %c0_40 = arith.constant 0 : index
      %c0_41 = arith.constant 0 : index
      %48 = vector.load %arg8[%c0_40, %c0_41] : memref<2x128xf32, #tpu.memory_space<vmem>>, vector<2x128xf32>
      %cst_42 = arith.constant dense<0.000000e+00> : vector<2xf32>
      %49 = vector.multi_reduction <add>, %48, %cst_42 [1] : vector<2x128xf32> to vector<2xf32>
      %50 = vector.shape_cast %49 : vector<2xf32> to vector<2x1xf32>
      %51 = arith.mulf %38, %41 : vector<2x1xf32>
      %cst_43 = arith.constant 2.560000e+02 : f32
      %52 = vector.broadcast %cst_43 : f32 to vector<2x1xf32>
      %53 = arith.divf %51, %52 : vector<2x1xf32>
      %54 = arith.subf %44, %53 : vector<2x1xf32>
      %55 = arith.mulf %41, %41 : vector<2x1xf32>
      %cst_44 = arith.constant 2.560000e+02 : f32
      %56 = vector.broadcast %cst_44 : f32 to vector<2x1xf32>
      %57 = arith.divf %55, %56 : vector<2x1xf32>
      %58 = arith.subf %50, %57 : vector<2x1xf32>
      %59 = arith.mulf %38, %38 : vector<2x1xf32>
      %cst_45 = arith.constant 2.560000e+02 : f32
      %60 = vector.broadcast %cst_45 : f32 to vector<2x1xf32>
      %61 = arith.divf %59, %60 : vector<2x1xf32>
      %62 = arith.subf %47, %61 : vector<2x1xf32>
      %cst_46 = arith.constant 9.99999993E-9 : f32
      %63 = vector.broadcast %cst_46 : f32 to vector<2x1xf32>
      %64 = arith.addf %58, %63 : vector<2x1xf32>
      %65 = arith.divf %54, %64 : vector<2x1xf32>
      %66 = arith.mulf %65, %65 : vector<2x1xf32>
      %67 = arith.mulf %66, %58 : vector<2x1xf32>
      %cst_47 = arith.constant 2.000000e+00 : f32
      %68 = vector.broadcast %cst_47 : f32 to vector<2x1xf32>
      %69 = arith.mulf %68, %65 : vector<2x1xf32>
      %70 = arith.mulf %69, %54 : vector<2x1xf32>
      %71 = arith.subf %62, %70 : vector<2x1xf32>
      %72 = arith.mulf %65, %65 : vector<2x1xf32>
      %73 = arith.mulf %72, %58 : vector<2x1xf32>
      %74 = arith.addf %71, %73 : vector<2x1xf32>
      %cst_48 = arith.constant 9.99999993E-9 : f32
      %75 = vector.broadcast %cst_48 : f32 to vector<2x1xf32>
      %76 = arith.addf %74, %75 : vector<2x1xf32>
      %77 = arith.divf %67, %76 : vector<2x1xf32>
      %78 = math.log %77 : vector<2x1xf32>
      %cst_49 = arith.constant 0.434294492 : f32
      %79 = vector.broadcast %cst_49 : f32 to vector<2x1xf32>
      %80 = arith.mulf %78, %79 : vector<2x1xf32>
      %cst_50 = arith.constant 1.000000e+01 : f32
      %81 = vector.broadcast %cst_50 : f32 to vector<2x1xf32>
      %82 = arith.mulf %81, %80 : vector<2x1xf32>
      %c0_51 = arith.constant 0 : index
      %c0_52 = arith.constant 0 : index
      %83 = vector.load %arg3[%c0_51, %c0_52] : memref<2x1xf32, #tpu.memory_space<vmem>>, vector<2x1xf32>
      tpu.vector_store %arg3[%c0_51, %c0_52], %82 {strides = array<i32>} : memref<2x1xf32, #tpu.memory_space<vmem>>, vector<2x1xf32>,
    } else {
    }
    return
  }
  func.func @transform_0(%arg0: i32) -> (i32, i32) {
    %c0_i32 = arith.constant 0 : i32
    %c0_i32_0 = arith.constant 0 : i32
    return %c0_i32, %arg0 : i32, i32
  }
  func.func @transform_1(%arg0: i32) -> (i32, i32) {
    %c0_i32 = arith.constant 0 : i32
    %c0_i32_0 = arith.constant 0 : i32
    return %c0_i32, %arg0 : i32, i32
  }
  func.func @transform_2(%arg0: i32) -> (i32, i32) {
    %c0_i32 = arith.constant 0 : i32
    %c0_i32_0 = arith.constant 0 : i32
    %c0_i32_1 = arith.constant 0 : i32
    return %c0_i32, %c0_i32_0 : i32, i32
  }
}

</mosaic_0001>

<llo_original>
// kernel: tpu_custom_call.1
$region0: #{tpu_custom_call.1}
  #allocation0 [shape = 'u32[]', space=smem, size = 0x4, offset = 0x4, fixed_abs, tag = 'smem constant byte address 0x4 - core index']
  #allocation1 [shape = 'u32[72,128]{1,0:T(1,128)}', space=vmem, size = 0x9000, scoped, tag = 'internal scratch']
  #allocation2 [shape = 'f32[2,128]{1,0:T(2,128)}', space=vmem, size = 0x400, scoped, tag = 'scratch operand']
  #allocation3 [shape = 'f32[2,128]{1,0:T(2,128)}', space=vmem, size = 0x400, scoped, tag = 'scratch operand']
  #allocation4 [shape = 'f32[2,128]{1,0:T(2,128)}', space=vmem, size = 0x400, scoped, tag = 'scratch operand']
  #allocation5 [shape = 'f32[2,128]{1,0:T(2,128)}', space=vmem, size = 0x400, scoped, tag = 'scratch operand']
  #allocation6 [shape = 'f32[2,128]{1,0:T(2,128)}', space=vmem, size = 0x400, scoped, tag = 'scratch operand']
  %s0 = inlined_call_operand.hbm [shape: f32[2,384], index: 0, kind: input, shape index: {}]
  %s1 = inlined_call_operand.hbm [shape: f32[2,256], index: 1, kind: input, shape index: {}]
  %s2 = inlined_call_operand.vmem [shape: f32[2,1], index: 2, kind: output, shape index: {}]
  %s3 = sld [smem:[#allocation0]]
  $region34: #{tpu_custom_call.1} parent=0
    _
  %s5 = ssub.s32 1, %s3
  %s6 = scalar_select 0, %s5, %s3
  $region1: #{tpu_custom_call.1} parent=0
    #allocation7 [shape = 'u8[2048]{0}', space=vmem, size = 0x800, scoped, tag = 'input window, operand 0, single buffered']
    #allocation8 [shape = 's32[1]{0}', space=sflag, size = 0x4, scoped, tag = 'scoped memory for tpu_custom_call.1']
    #allocation9 [shape = 'u8[2048]{0}', space=vmem, size = 0x800, scoped, tag = 'input window, operand 1, single buffered']
    #allocation10 [shape = 's32[1]{0}', space=sflag, size = 0x4, scoped, tag = 'scoped memory for tpu_custom_call.1']
    %7 = vsyncpa [#allocation8], 0
    %8 = vsyncpa [#allocation10], 0
    // Predicated region
    $region2: #{tpu_custom_call.1} parent=1 // pred_check
      _
    $region3: #{tpu_custom_call.1} parent=1 // pred_check_branch
      %10 = sbr.rel (0) target = $region5
    $region4: #{tpu_custom_call.1} parent=1 // pred_region
      %12 = vsyncadd [#allocation8], 0
      %s14 = sshll.u32 %s0, 4
      %s15 = int_to_ptr.hbm [resolvable:$true] %s14
      %s16 = sshll.u32 [#allocation7], 4
      %s17 = int_to_ptr.vmem [resolvable:$true] %s16
      %19 = dma.hbm_to_vmem [thread:$0]  %s15, 64, %s17, [#allocation8]
    $region5: #{tpu_custom_call.1} parent=1 // pred_fallthru
      _
    // Predicated region
    $region6: #{tpu_custom_call.1} parent=1 // pred_check
      _
    $region7: #{tpu_custom_call.1} parent=1 // pred_check_branch
      %21 = sbr.rel (0) target = $region9
    $region8: #{tpu_custom_call.1} parent=1 // pred_region
      %23 = vsyncadd [#allocation10], 0
      %s25 = sshll.u32 %s1, 4
      %s26 = int_to_ptr.hbm [resolvable:$true] %s25
      %s27 = sshll.u32 [#allocation9], 4
      %s28 = int_to_ptr.vmem [resolvable:$true] %s27
      %30 = dma.hbm_to_vmem [thread:$0]  %s26, 64, %s28, [#allocation10]
    $region9: #{tpu_custom_call.1} parent=1 // pred_fallthru
      _
    // Predicated region
    $region10: #{tpu_custom_call.1} parent=1 // pred_check
      _
    $region11: #{tpu_custom_call.1} parent=1 // pred_check_branch
      %32 = sbr.rel (0) target = $region13
    $region12: #{tpu_custom_call.1} parent=1 // pred_region
      %34 = dma.done [#allocation8], 64
    $region13: #{tpu_custom_call.1} parent=1 // pred_fallthru
      _
    // Predicated region
    $region14: #{tpu_custom_call.1} parent=1 // pred_check
      _
    $region15: #{tpu_custom_call.1} parent=1 // pred_check_branch
      %36 = sbr.rel (0) target = $region17
    $region16: #{tpu_custom_call.1} parent=1 // pred_region
      %38 = dma.done [#allocation10], 64
    $region17: #{tpu_custom_call.1} parent=1 // pred_fallthru
      _
    %p39 = scmp.eq.s32.totalorder 0, 0
    // Predicated region
    $region18: #{tpu_custom_call.1} parent=1 // pred_check
      %p40 = pneg %p39
    $region19: #{tpu_custom_call.1} parent=1 // pred_check_branch
      %42 = sbr.rel (%p40) target = $region21
    $region20: #{tpu_custom_call.1} parent=1 // pred_region
      %43 = vst [vmem:[#allocation2] sm:$0x3] 0.0
      %44 = vst [vmem:[#allocation3] sm:$0x3] 0.0
      %45 = vst [vmem:[#allocation4] sm:$0x3] 0.0
      %46 = vst [vmem:[#allocation5] sm:$0x3] 0.0
      %47 = vst [vmem:[#allocation6] sm:$0x3] 0.0
    $region21: #{tpu_custom_call.1} parent=1 // pred_fallthru
      _
    %v48 = vld [vmem:[#allocation2] sm:$0x3]
    %v49 = vld [vmem:[#allocation3] sm:$0x3]
    %v50 = vld [vmem:[#allocation4] sm:$0x3]
    %v51 = vld [vmem:[#allocation5] sm:$0x3]
    %v52 = vld [vmem:[#allocation6] sm:$0x3]
    %v53 = vld [vmem:[#allocation7] sm:$0x3]
    %v54 = vld [vmem:[#allocation9] sm:$0x3]
    %v55 = vadd.f32 %v48, %v53
    %v56 = vadd.f32 %v49, %v54
    %v57 = vmul.f32 %v53, %v54
    %v58 = vadd.f32 %v50, %v57
    %v59 = vmul.f32 %v53, %v53
    %v60 = vadd.f32 %v51, %v59
    %v61 = vmul.f32 %v54, %v54
    %v62 = vadd.f32 %v52, %v61
    %v63 = vld [vmem:[#allocation7 + $0x2] sm:$0x3]
    %v64 = vld [vmem:[#allocation9 + $0x2] sm:$0x3]
    %v65 = vadd.f32 %v55, %v63
    %v66 = vadd.f32 %v56, %v64
    %v67 = vmul.f32 %v63, %v64
    %v68 = vadd.f32 %v58, %v67
    %v69 = vmul.f32 %v63, %v63
    %v70 = vadd.f32 %v60, %v69
    %v71 = vmul.f32 %v64, %v64
    %v72 = vadd.f32 %v62, %v71
    %73 = vst [vmem:[#allocation2] sm:$0x3] %v65
    %74 = vst [vmem:[#allocation3] sm:$0x3] %v66
    %75 = vst [vmem:[#allocation4] sm:$0x3] %v68
    %76 = vst [vmem:[#allocation5] sm:$0x3] %v70
    %77 = vst [vmem:[#allocation6] sm:$0x3] %v72
    // Predicated region
    $region22: #{tpu_custom_call.1} parent=1 // pred_check
      %p78 = pneg %p39
    $region23: #{tpu_custom_call.1} parent=1 // pred_check_branch
      %80 = sbr.rel (%p78) target = $region25
    $region24: #{tpu_custom_call.1} parent=1 // pred_region
      %v81 = vld [vmem:[#allocation2] sm:$0x3]
      %vm82 = vcmask 1041408
      %v83 = vsel %vm82, %v81, 0.0
      %84 = vadd.xlane.f32.xlu0 %v83
      %v85 = vpop.xlane.xlu0 %84
      %v86 = vld [vmem:[#allocation3] sm:$0x3]
      %v87 = vsel %vm82, %v86, 0.0
      %88 = vadd.xlane.f32.xlu0 %v87
      %v89 = vpop.xlane.xlu0 %88
      %v90 = vld [vmem:[#allocation4] sm:$0x3]
      %v91 = vsel %vm82, %v90, 0.0
      %92 = vadd.xlane.f32.xlu0 %v91
      %v93 = vpop.xlane.xlu0 %92
      %v94 = vld [vmem:[#allocation5] sm:$0x3]
      %v95 = vsel %vm82, %v94, 0.0
      %96 = vadd.xlane.f32.xlu0 %v95
      %v97 = vpop.xlane.xlu0 %96
      %v98 = vld [vmem:[#allocation6] sm:$0x3]
      %v99 = vsel %vm82, %v98, 0.0
      %100 = vadd.xlane.f32.xlu0 %v99
      %v101 = vpop.xlane.xlu0 %100
      %v102 = vmul.f32 %v85, %v89
      %v103 = vrcp.pop 256.0
      %v104 = vmul.f32 256.0, %v103
      %v105 = vsub.f32 1.0, %v104
      %v106 = vmul.f32 %v103, %v105
      %v107 = vadd.f32 %v103, %v106
      %vm108 = vweird.f32 %v103
      %v109 = vsel %vm108, %v103, %v107
      %v110 = vmul.f32 %v102, %v109
      %v111 = vsub.f32 %v93, %v110
      %v112 = vmul.f32 %v89, %v89
      %v113 = vmul.f32 %v112, %v109
      %v114 = vsub.f32 %v101, %v113
      %v115 = vmul.f32 %v85, %v85
      %v116 = vmul.f32 %v115, %v109
      %v117 = vsub.f32 %v97, %v116
      %v118 = vadd.f32 %v114, 1e-08
      %v119 = vrcp.pop %v118
      %v120 = vmul.f32 %v118, %v119
      %v121 = vsub.f32 1.0, %v120
      %v122 = vmul.f32 %v119, %v121
      %v123 = vadd.f32 %v119, %v122
      %vm124 = vweird.f32 %v118
      %vm125 = vweird.f32 %v119
      %vm126 = vmor %vm124, %vm125
      %v127 = vsel %vm126, %v119, %v123
      %v128 = vand.u32 2147483647, %v118
      %vm129 = vcmp.eq.f32.partialorder %v128, 8.507059e+37
      %v130 = vand.u32 %v118, 2147483648
      %v131 = vor.u32 1.1754944e-38, %v130
      %v132 = vsel %vm129, %v131, %v127
      %v133 = vmul.f32 %v111, %v132
      %v134 = vmul.f32 %v133, %v133
      %v135 = vmul.f32 %v134, %v114
      %v136 = vmul.f32 %v133, 2.0
      %v137 = vmul.f32 %v136, %v111
      %v138 = vsub.f32 %v117, %v137
      %v139 = vadd.f32 %v138, %v135
      %v140 = vadd.f32 %v139, 1e-08
      %v141 = vrcp.pop %v140
      %v142 = vmul.f32 %v140, %v141
      %v143 = vsub.f32 1.0, %v142
      %v144 = vmul.f32 %v141, %v143
      %v145 = vadd.f32 %v141, %v144
      %vm146 = vweird.f32 %v140
      %vm147 = vweird.f32 %v141
      %vm148 = vmor %vm146, %vm147
      %v149 = vsel %vm148, %v141, %v145
      %v150 = vand.u32 2147483647, %v140
      %vm151 = vcmp.eq.f32.partialorder %v150, 8.507059e+37
      %v152 = vand.u32 %v140, 2147483648
      %v153 = vor.u32 1.1754944e-38, %v152
      %v154 = vsel %vm151, %v153, %v149
      %v155 = vmul.f32 %v135, %v154
      %v156 = vlog2.pop %v155
      %v157 = vmul.f32 %v156, 0.6931472
      %v158 = vmul.f32 %v157, 0.4342945
      %v159 = vmul.f32 %v158, 10.0
      %vm160 = vcmask 1024
      %161 = vst.msk [vmem:[%s2] sm:$0x3] %vm160, %v159
    $region25: #{tpu_custom_call.1} parent=1 // pred_fallthru
      _
    // Predicated region
    $region26: #{tpu_custom_call.1} parent=1 // pred_check
      _
    $region27: #{tpu_custom_call.1} parent=1 // pred_check_branch
      %163 = sbr.rel (0) target = $region29
    $region28: #{tpu_custom_call.1} parent=1 // pred_region
      _
    $region29: #{tpu_custom_call.1} parent=1 // pred_fallthru
      _
    // Predicated region
    $region30: #{tpu_custom_call.1} parent=1 // pred_check
      _
    $region31: #{tpu_custom_call.1} parent=1 // pred_check_branch
      %165 = sbr.rel (0) target = $region33
    $region32: #{tpu_custom_call.1} parent=1 // pred_region
      _
    $region33: #{tpu_custom_call.1} parent=1 // pred_fallthru
      _
    %166 = vsyncpa [#allocation8], 1
    %167 = vsyncpa [#allocation10], 1

</llo_original>
